<compile_context>
chip_gen: v5e
topology: v5e:2x2
jax: 0.10.0
libtpu: 0.0.40
codegen_flags: <defaults>
</compile_context>

<pallas_src>
import jax
import jax.numpy as jnp
from jax.experimental import pallas as pl
from jax.experimental.pallas import tpu as pltpu

LANES = 128
SUBL = 8
TILE_ROWS_MAX = 512          # rows of 128 lanes per grid step (perf-review sweet spot)
OUT_OF_BOX = -1.0e8          # pad coordinate: outside every gt box -> tgt = 0
PAD_LOGIT = -1.0e4           # pad logit: sigmoid == 0, focal loss exactly 0


def _round_up(x, m):
    return (x + m - 1) // m * m


# ----------------------------------------------------------------------------
# Fused kernel: per-pixel salience mask target + sigmoid focal loss (per-tile
# lane-dense partial sums; no carried state -> fully parallel grid axis)
# ----------------------------------------------------------------------------
def _make_kernel(B: int, N: int, alpha: float, gamma: float, noise_scale: float):
    thr = 0.5 * noise_scale
    w_base = 1.0 - alpha
    w_slope = 2.0 * alpha - 1.0

    def kernel(box_ref,              # SMEM (B*N*6,) f32: x0,y0,x1,y1,1/w,1/h per box
               cx_ref, cy_ref,       # VMEM (tile_rows, 128) pixel centres
               minl_ref, maxl_ref,   # VMEM (tile_rows, 128) per-pixel level limits
               logits_ref,           # VMEM (B, tile_rows, 128)
               out_ref):             # VMEM (1, 16, 128): [loss fold | num_pos fold]
        cx = cx_ref[...]
        cy = cy_ref[...]
        minl = minl_ref[...]
        maxl = maxl_ref[...]

        loss_vec = None
        pos_vec = None

        for b in range(B):
            mask = None
            any_pos = None
            for n in range(N):
                base = (b * N + n) * 6
                x0 = box_ref[base + 0]
                y0 = box_ref[base + 1]
                x1 = box_ref[base + 2]
                y1 = box_ref[base + 3]
                inv_w = box_ref[base + 4]   # 1 / (left + right)
                inv_h = box_ref[base + 5]   # 1 / (top + bottom)

                left = cx - x0
                top = cy - y0
                right = x1 - cx
                bottom = y1 - cy

                min_d = jnp.minimum(jnp.minimum(left, top),
                                    jnp.minimum(right, bottom))
                max_d = jnp.maximum(jnp.maximum(left, top),
                                    jnp.maximum(right, bottom))

                in_box = min_d > 0.0
                pos = in_box & (max_d > minl) & (max_d <= maxl)

                dx = (left - right) * inv_w
                dy = (top - bottom) * inv_h
                conf = jnp.sqrt(dx * dx + dy * dy) * 0.5
                cpb = jnp.where(in_box, 1.0 - conf, 0.0)

                if n == 0:          # hoisted init: no zero-broadcast, no max/or with zeros
                    mask = cpb
                    any_pos = pos
                else:
                    mask = jnp.maximum(mask, cpb)
                    any_pos = any_pos | pos

            tgt = jnp.where(any_pos, mask, 0.0)
            # TODO(synk): noise_scale > 0 path (torch.rand_like blending) not implemented.

            # sigmoid focal loss, EUP-lean: one exp, one log1p, approx rcp + 1 Newton step.
            x = logits_ref[b]                               # (tile_rows, 128)
            e = jnp.exp(-jnp.abs(x))
            ce = jnp.maximum(x, 0.0) - x * tgt + jnp.log1p(e)
            denom = 1.0 + e
            r0 = pl.reciprocal(denom, approx=True)          # EUP vrcp (otherwise-idle slot)
            recip = r0 * (2.0 - denom * r0)                 # Newton refine -> ~f32 accuracy
            p = jnp.where(x >= 0.0, recip, e * recip)       # == sigmoid(x)
            one_m = p + tgt * (1.0 - (p + p))               # == 1 - p_t
            if gamma == 2.0:
                mod = one_m * one_m
            else:
                mod = one_m ** gamma
            loss = ce * mod * (w_base + w_slope * tgt)      # alpha*t + (1-alpha)*(1-t)
            pos_ind = (tgt > thr).astype(jnp.float32)

            if b == 0:
                loss_vec = loss
                pos_vec = pos_ind
            else:
                loss_vec = loss_vec + loss
                pos_vec = pos_vec + pos_ind

        # One fold per tile: (tile_rows, 128) -> (8, 128) lane-dense partials.
        r = cx.shape[0]
        out_ref[0, 0:SUBL, :] = loss_vec.reshape(r // SUBL, SUBL, LANES).sum(axis=0)
        out_ref[0, SUBL:2 * SUBL, :] = pos_vec.reshape(r // SUBL, SUBL, LANES).sum(axis=0)

    return kernel


# ----------------------------------------------------------------------------
# Host-side glue (plain JAX): box conversion, pixel coordinates, padding
# ----------------------------------------------------------------------------
def box_cxcywh_to_xyxy(boxes):
    cx, cy, w, h = boxes[:, 0], boxes[:, 1], boxes[:, 2], boxes[:, 3]
    return jnp.stack([cx - 0.5 * w, cy - 0.5 * h, cx + 0.5 * w, cy + 0.5 * h], axis=-1)


def get_pixel_coordinate(h, w, stride):
    ys = jnp.linspace(0.5, h - 0.5, h, dtype=jnp.float32) * stride[0]
    xs = jnp.linspace(0.5, w - 0.5, w, dtype=jnp.float32) * stride[1]
    coord_y, coord_x = jnp.meshgrid(ys, xs, indexing="ij")
    return coord_x.reshape(-1), coord_y.reshape(-1)   # (HW,), (HW,)


def salience_criterion_forward(foreground_mask, targets, feature_strides, image_sizes,
                               limit_range=((-1, 64), (64, 128), (128, 256), (256, 99999)),
                               noise_scale=0.0, alpha=0.25, gamma=2.0):
    B = foreground_mask[0].shape[0]

    # Scaled gt boxes (same #boxes per image assumed for this synthetic test)
    gt_list = []
    for t, (img_h, img_w) in zip(targets, image_sizes):
        boxes = box_cxcywh_to_xyxy(t["boxes"])
        scale = jnp.array([img_w, img_h, img_w, img_h], dtype=jnp.float32)
        gt_list.append(boxes * scale)
    gt = jnp.stack(gt_list)                                  # (B, N, 4)
    N = gt.shape[1]
    x0, y0, x1, y1 = gt[..., 0], gt[..., 1], gt[..., 2], gt[..., 3]
    # Matches the reference exactly (degenerate boxes give inf/NaN there too).
    inv_w = 1.0 / (x1 - x0)                                  # 1/(left+right), per box
    inv_h = 1.0 / (y1 - y0)                                  # 1/(top+bottom), per box
    box_flat = jnp.stack([x0, y0, x1, y1, inv_w, inv_h], axis=-1).reshape(-1)  # (B*N*6,)

    # Per-pixel coords + per-pixel level limits, concatenated across levels
    cxs, cys, mins, maxs = [], [], [], []
    for lvl, (m, st) in enumerate(zip(foreground_mask, feature_strides)):
        h, w = m.shape[-2:]
        cx_l, cy_l = get_pixel_coordinate(h, w, st)
        cxs.append(cx_l)
        cys.append(cy_l)
        mn, mx = limit_range[lvl]
        mins.append(jnp.full((h * w,), float(mn), jnp.float32))
        maxs.append(jnp.full((h * w,), float(mx), jnp.float32))
    cx = jnp.concatenate(cxs)
    cy = jnp.concatenate(cys)
    minl = jnp.concatenate(mins)
    maxl = jnp.concatenate(maxs)
    S = int(cx.shape[0])

    logits = jnp.concatenate([e.reshape(B, -1) for e in foreground_mask], axis=-1)  # (B, S)

    # Lane-dense layout: pad S to rows_pad * 128, reshape to (rows_pad, 128)
    rows = -(-S // LANES)
    tile_rows = min(_round_up(rows, 8), TILE_ROWS_MAX)
    # v7x VMEM budget: keep the double-buffered logits block well under the scoped limit.
    while B * tile_rows * LANES * 4 * 2 > (16 << 20) and tile_rows > 8:
        tile_rows //= 2
    rows_pad = _round_up(rows, tile_rows)
    S_pad = rows_pad * LANES
    pad = S_pad - S

    def pad1(a, v):
        return jnp.pad(a, (0, pad), constant_values=v).reshape(rows_pad, LANES)

    cx2 = pad1(cx, OUT_OF_BOX)
    cy2 = pad1(cy, OUT_OF_BOX)
    minl2 = pad1(minl, 0.0)
    maxl2 = pad1(maxl, 0.0)
    logits2 = jnp.pad(logits, ((0, 0), (0, pad)),
                      constant_values=PAD_LOGIT).reshape(B, rows_pad, LANES)

    num_tiles = rows_pad // tile_rows

    partial = pl.pallas_call(
        _make_kernel(B, N, float(alpha), float(gamma), float(noise_scale)),
        out_shape=jax.ShapeDtypeStruct((num_tiles, 2 * SUBL, LANES), jnp.float32),
        grid=(num_tiles,),
        in_specs=[
            pl.BlockSpec(memory_space=pltpu.MemorySpace.SMEM),          # boxes
            pl.BlockSpec((tile_rows, LANES), lambda t: (t, 0)),         # cx
            pl.BlockSpec((tile_rows, LANES), lambda t: (t, 0)),         # cy
            pl.BlockSpec((tile_rows, LANES), lambda t: (t, 0)),         # min limit
            pl.BlockSpec((tile_rows, LANES), lambda t: (t, 0)),         # max limit
            pl.BlockSpec((B, tile_rows, LANES), lambda t: (0, t, 0)),   # logits
        ],
        out_specs=pl.BlockSpec((1, 2 * SUBL, LANES), lambda t: (t, 0, 0)),
        compiler_params=pltpu.CompilerParams(
            dimension_semantics=("parallel",)),   # no carried state -> megacore-shardable
    )(box_flat, cx2, cy2, minl2, maxl2, logits2)

    # Tiny final reduction in plain JAX: loss.mean(1).sum()/num_pos * S == sum(loss)/num_pos
    loss_sum = jnp.sum(partial[:, :SUBL, :])
    pos_sum = jnp.sum(partial[:, SUBL:, :])
    loss = loss_sum / jnp.maximum(pos_sum, 1.0)
    return {"loss_salience": loss}


# ----------------------------------------------------------------------------
# Pure-JAX reference (for verification)
# ----------------------------------------------------------------------------
def reference_forward(foreground_mask, targets, feature_strides, image_sizes,
                      limit_range, alpha, gamma):
    gt_boxes_list = []
    for t, (img_h, img_w) in zip(targets, image_sizes):
        boxes = box_cxcywh_to_xyxy(t["boxes"])
        scale = jnp.array([img_w, img_h, img_w, img_h], dtype=jnp.float32)
        gt_boxes_list.append(boxes * scale)

    mts = []
    for lvl, (m, st) in enumerate(zip(foreground_mask, feature_strides)):
        h, w = m.shape[-2:]
        cx, cy = get_pixel_coordinate(h, w, st)
        mn, mx = limit_range[lvl]
        per_img = []
        for boxes in gt_boxes_list:
            l = cx[:, None] - boxes[None, :, 0]
            t_ = cy[:, None] - boxes[None, :, 1]
            r = boxes[None, :, 2] - cx[:, None]
            b_ = boxes[None, :, 3] - cy[:, None]
            bd = jnp.stack([l, t_, r, b_], -1)
            mind, maxd = bd.min(-1), bd.max(-1)
            in_box = mind > 0
            pos = in_box & (maxd > mn) & (maxd <= mx)
            dx = (l - r) / (l + r)
            dy = (t_ - b_) / (t_ + b_)
            conf = jnp.sqrt(dx ** 2 + dy ** 2) / 2
            cpb = jnp.where(in_box, 1.0 - conf, 0.0)
            mask = cpb.max(-1)
            anyp = pos.astype(jnp.int32).sum(-1) >= 1
            per_img.append(jnp.where(anyp, mask, 0.0))
        mts.append(jnp.stack(per_img))
    mt = jnp.concatenate(mts, 1)
    fg = jnp.concatenate([e.reshape(e.shape[0], -1) for e in foreground_mask], -1)
    num_pos = jnp.maximum(jnp.sum(mt > 0.0), 1).astype(jnp.float32)
    p = jax.nn.sigmoid(fg)
    ce = jnp.maximum(fg, 0.0) - fg * mt + jnp.log1p(jnp.exp(-jnp.abs(fg)))
    p_t = p * mt + (1 - p) * (1 - mt)
    loss = ce * (1 - p_t) ** gamma
    loss = (alpha * mt + (1 - alpha) * (1 - mt)) * loss
    return loss.mean(1).sum() / num_pos * fg.shape[1]


if __name__ == "__main__":
    key = jax.random.PRNGKey(0)
    B, N = 2, 3
    spatial = [16, 8, 4, 2]
    feature_strides = [(8.0, 8.0), (16.0, 16.0), (32.0, 32.0), (64.0, 64.0)]
    image_sizes = [(128.0, 128.0), (128.0, 128.0)]
    limit_range = ((-1, 64), (64, 128), (128, 256), (256, 99999))
    alpha, gamma, noise_scale = 0.25, 2.0, 0.0

    keys = jax.random.split(key, len(spatial) + B)
    foreground_mask = [
        jax.random.normal(keys[i], (B, 1, s, s), dtype=jnp.float32)
        for i, s in enumerate(spatial)
    ]
    targets = []
    for b in range(B):
        kb = keys[len(spatial) + b]
        kc, ks = jax.random.split(kb)
        centers = jax.random.uniform(kc, (N, 2), minval=0.3, maxval=0.7)
        sizes = jax.random.uniform(ks, (N, 2), minval=0.2, maxval=0.5)
        targets.append({"boxes": jnp.concatenate([centers, sizes], axis=-1).astype(jnp.float32)})

    out = salience_criterion_forward(
        foreground_mask, targets, feature_strides, image_sizes,
        limit_range=limit_range, noise_scale=noise_scale, alpha=alpha, gamma=gamma)
    loss = jax.block_until_ready(out["loss_salience"])

    ref = reference_forward(foreground_mask, targets, feature_strides, image_sizes,
                            limit_range, alpha, gamma)
    assert jnp.isfinite(loss), "non-finite loss"
    # Slightly relaxed rtol to absorb the approx-EUP reciprocal (Newton-refined) path.
    assert jnp.allclose(loss, ref, rtol=5e-4, atol=1e-5), (loss, ref)
    print("KERNEL_OK")
</pallas_src>

<mosaic_0001>
module attributes {stable_mosaic.version = 11 : i64} {
  func.func @kernel(%arg0: i32, %arg1: memref<36xf32, #tpu.memory_space<smem>>, %arg2: memref<8x128xf32, #tpu.memory_space<vmem>>, %arg3: memref<8x128xf32, #tpu.memory_space<vmem>>, %arg4: memref<8x128xf32, #tpu.memory_space<vmem>>, %arg5: memref<8x128xf32, #tpu.memory_space<vmem>>, %arg6: memref<2x8x128xf32, #tpu.memory_space<vmem>>, %arg7: memref<1x16x128xf32, #tpu.memory_space<vmem>>) attributes {dimension_semantics = [#tpu.dimension_semantics<parallel>], iteration_bounds = array<i64: 1>, scalar_prefetch = 0 : i64, scratch_operands = 0 : i64, tpu.core_type = #tpu.core_type<tc>, window_params = [{transform_indices = @transform_0, window_bounds = array<i64: 36>}, {transform_indices = @transform_1, window_bounds = array<i64: 8, 128>}, {transform_indices = @transform_2, window_bounds = array<i64: 8, 128>}, {transform_indices = @transform_3, window_bounds = array<i64: 8, 128>}, {transform_indices = @transform_4, window_bounds = array<i64: 8, 128>}, {transform_indices = @transform_5, window_bounds = array<i64: 2, 8, 128>}, {transform_indices = @transform_6, window_bounds = array<i64: 1, 16, 128>}]} {
    %c0 = arith.constant 0 : index
    %c0_0 = arith.constant 0 : index
    %0 = vector.load %arg2[%c0, %c0_0] : memref<8x128xf32, #tpu.memory_space<vmem>>, vector<8x128xf32>
    %c0_1 = arith.constant 0 : index
    %c0_2 = arith.constant 0 : index
    %1 = vector.load %arg3[%c0_1, %c0_2] : memref<8x128xf32, #tpu.memory_space<vmem>>, vector<8x128xf32>
    %c0_3 = arith.constant 0 : index
    %c0_4 = arith.constant 0 : index
    %2 = vector.load %arg4[%c0_3, %c0_4] : memref<8x128xf32, #tpu.memory_space<vmem>>, vector<8x128xf32>
    %c0_5 = arith.constant 0 : index
    %c0_6 = arith.constant 0 : index
    %3 = vector.load %arg5[%c0_5, %c0_6] : memref<8x128xf32, #tpu.memory_space<vmem>>, vector<8x128xf32>
    %c0_7 = arith.constant 0 : index
    %4 = memref.load %arg1[%c0_7] : memref<36xf32, #tpu.memory_space<smem>>
    %c1 = arith.constant 1 : index
    %5 = memref.load %arg1[%c1] : memref<36xf32, #tpu.memory_space<smem>>
    %c2 = arith.constant 2 : index
    %6 = memref.load %arg1[%c2] : memref<36xf32, #tpu.memory_space<smem>>
    %c3 = arith.constant 3 : index
    %7 = memref.load %arg1[%c3] : memref<36xf32, #tpu.memory_space<smem>>
    %c4 = arith.constant 4 : index
    %8 = memref.load %arg1[%c4] : memref<36xf32, #tpu.memory_space<smem>>
    %c5 = arith.constant 5 : index
    %9 = memref.load %arg1[%c5] : memref<36xf32, #tpu.memory_space<smem>>
    %10 = vector.broadcast %4 : f32 to vector<8x128xf32>
    %11 = arith.subf %0, %10 : vector<8x128xf32>
    %12 = vector.broadcast %5 : f32 to vector<8x128xf32>
    %13 = arith.subf %1, %12 : vector<8x128xf32>
    %14 = vector.broadcast %6 : f32 to vector<8x128xf32>
    %15 = arith.subf %14, %0 : vector<8x128xf32>
    %16 = vector.broadcast %7 : f32 to vector<8x128xf32>
    %17 = arith.subf %16, %1 : vector<8x128xf32>
    %18 = arith.minimumf %11, %13 : vector<8x128xf32>
    %19 = arith.minimumf %15, %17 : vector<8x128xf32>
    %20 = arith.minimumf %18, %19 : vector<8x128xf32>
    %21 = arith.maximumf %11, %13 : vector<8x128xf32>
    %22 = arith.maximumf %15, %17 : vector<8x128xf32>
    %23 = arith.maximumf %21, %22 : vector<8x128xf32>
    %cst = arith.constant 0.000000e+00 : f32
    %24 = vector.broadcast %cst : f32 to vector<8x128xf32>
    %25 = arith.cmpf ogt, %20, %24 : vector<8x128xf32>
    %26 = arith.cmpf ogt, %23, %2 : vector<8x128xf32>
    %27 = arith.andi %25, %26 : vector<8x128xi1>
    %28 = arith.cmpf ole, %23, %3 : vector<8x128xf32>
    %29 = arith.andi %27, %28 : vector<8x128xi1>
    %30 = arith.subf %11, %15 : vector<8x128xf32>
    %31 = vector.broadcast %8 : f32 to vector<8x128xf32>
    %32 = arith.mulf %30, %31 : vector<8x128xf32>
    %33 = arith.subf %13, %17 : vector<8x128xf32>
    %34 = vector.broadcast %9 : f32 to vector<8x128xf32>
    %35 = arith.mulf %33, %34 : vector<8x128xf32>
    %36 = arith.mulf %32, %32 : vector<8x128xf32>
    %37 = arith.mulf %35, %35 : vector<8x128xf32>
    %38 = arith.addf %36, %37 : vector<8x128xf32>
    %39 = math.sqrt %38 : vector<8x128xf32>
    %cst_8 = arith.constant 5.000000e-01 : f32
    %40 = vector.broadcast %cst_8 : f32 to vector<8x128xf32>
    %41 = arith.mulf %39, %40 : vector<8x128xf32>
    %cst_9 = arith.constant 1.000000e+00 : f32
    %42 = vector.broadcast %cst_9 : f32 to vector<8x128xf32>
    %43 = arith.subf %42, %41 : vector<8x128xf32>
    %cst_10 = arith.constant 0.000000e+00 : f32
    %44 = vector.broadcast %cst_10 : f32 to vector<8x128xf32>
    %45 = arith.select %25, %43, %44 : vector<8x128xi1>, vector<8x128xf32>
    %c6 = arith.constant 6 : index
    %46 = memref.load %arg1[%c6] : memref<36xf32, #tpu.memory_space<smem>>
    %c7 = arith.constant 7 : index
    %47 = memref.load %arg1[%c7] : memref<36xf32, #tpu.memory_space<smem>>
    %c8 = arith.constant 8 : index
    %48 = memref.load %arg1[%c8] : memref<36xf32, #tpu.memory_space<smem>>
    %c9 = arith.constant 9 : index
    %49 = memref.load %arg1[%c9] : memref<36xf32, #tpu.memory_space<smem>>
    %c10 = arith.constant 10 : index
    %50 = memref.load %arg1[%c10] : memref<36xf32, #tpu.memory_space<smem>>
    %c11 = arith.constant 11 : index
    %51 = memref.load %arg1[%c11] : memref<36xf32, #tpu.memory_space<smem>>
    %52 = vector.broadcast %46 : f32 to vector<8x128xf32>
    %53 = arith.subf %0, %52 : vector<8x128xf32>
    %54 = vector.broadcast %47 : f32 to vector<8x128xf32>
    %55 = arith.subf %1, %54 : vector<8x128xf32>
    %56 = vector.broadcast %48 : f32 to vector<8x128xf32>
    %57 = arith.subf %56, %0 : vector<8x128xf32>
    %58 = vector.broadcast %49 : f32 to vector<8x128xf32>
    %59 = arith.subf %58, %1 : vector<8x128xf32>
    %60 = arith.minimumf %53, %55 : vector<8x128xf32>
    %61 = arith.minimumf %57, %59 : vector<8x128xf32>
    %62 = arith.minimumf %60, %61 : vector<8x128xf32>
    %63 = arith.maximumf %53, %55 : vector<8x128xf32>
    %64 = arith.maximumf %57, %59 : vector<8x128xf32>
    %65 = arith.maximumf %63, %64 : vector<8x128xf32>
    %cst_11 = arith.constant 0.000000e+00 : f32
    %66 = vector.broadcast %cst_11 : f32 to vector<8x128xf32>
    %67 = arith.cmpf ogt, %62, %66 : vector<8x128xf32>
    %68 = arith.cmpf ogt, %65, %2 : vector<8x128xf32>
    %69 = arith.andi %67, %68 : vector<8x128xi1>
    %70 = arith.cmpf ole, %65, %3 : vector<8x128xf32>
    %71 = arith.andi %69, %70 : vector<8x128xi1>
    %72 = arith.subf %53, %57 : vector<8x128xf32>
    %73 = vector.broadcast %50 : f32 to vector<8x128xf32>
    %74 = arith.mulf %72, %73 : vector<8x128xf32>
    %75 = arith.subf %55, %59 : vector<8x128xf32>
    %76 = vector.broadcast %51 : f32 to vector<8x128xf32>
    %77 = arith.mulf %75, %76 : vector<8x128xf32>
    %78 = arith.mulf %74, %74 : vector<8x128xf32>
    %79 = arith.mulf %77, %77 : vector<8x128xf32>
    %80 = arith.addf %78, %79 : vector<8x128xf32>
    %81 = math.sqrt %80 : vector<8x128xf32>
    %cst_12 = arith.constant 5.000000e-01 : f32
    %82 = vector.broadcast %cst_12 : f32 to vector<8x128xf32>
    %83 = arith.mulf %81, %82 : vector<8x128xf32>
    %cst_13 = arith.constant 1.000000e+00 : f32
    %84 = vector.broadcast %cst_13 : f32 to vector<8x128xf32>
    %85 = arith.subf %84, %83 : vector<8x128xf32>
    %cst_14 = arith.constant 0.000000e+00 : f32
    %86 = vector.broadcast %cst_14 : f32 to vector<8x128xf32>
    %87 = arith.select %67, %85, %86 : vector<8x128xi1>, vector<8x128xf32>
    %88 = arith.maximumf %45, %87 : vector<8x128xf32>
    %89 = arith.ori %29, %71 : vector<8x128xi1>
    %c12 = arith.constant 12 : index
    %90 = memref.load %arg1[%c12] : memref<36xf32, #tpu.memory_space<smem>>
    %c13 = arith.constant 13 : index
    %91 = memref.load %arg1[%c13] : memref<36xf32, #tpu.memory_space<smem>>
    %c14 = arith.constant 14 : index
    %92 = memref.load %arg1[%c14] : memref<36xf32, #tpu.memory_space<smem>>
    %c15 = arith.constant 15 : index
    %93 = memref.load %arg1[%c15] : memref<36xf32, #tpu.memory_space<smem>>
    %c16 = arith.constant 16 : index
    %94 = memref.load %arg1[%c16] : memref<36xf32, #tpu.memory_space<smem>>
    %c17 = arith.constant 17 : index
    %95 = memref.load %arg1[%c17] : memref<36xf32, #tpu.memory_space<smem>>
    %96 = vector.broadcast %90 : f32 to vector<8x128xf32>
    %97 = arith.subf %0, %96 : vector<8x128xf32>
    %98 = vector.broadcast %91 : f32 to vector<8x128xf32>
    %99 = arith.subf %1, %98 : vector<8x128xf32>
    %100 = vector.broadcast %92 : f32 to vector<8x128xf32>
    %101 = arith.subf %100, %0 : vector<8x128xf32>
    %102 = vector.broadcast %93 : f32 to vector<8x128xf32>
    %103 = arith.subf %102, %1 : vector<8x128xf32>
    %104 = arith.minimumf %97, %99 : vector<8x128xf32>
    %105 = arith.minimumf %101, %103 : vector<8x128xf32>
    %106 = arith.minimumf %104, %105 : vector<8x128xf32>
    %107 = arith.maximumf %97, %99 : vector<8x128xf32>
    %108 = arith.maximumf %101, %103 : vector<8x128xf32>
    %109 = arith.maximumf %107, %108 : vector<8x128xf32>
    %cst_15 = arith.constant 0.000000e+00 : f32
    %110 = vector.broadcast %cst_15 : f32 to vector<8x128xf32>
    %111 = arith.cmpf ogt, %106, %110 : vector<8x128xf32>
    %112 = arith.cmpf ogt, %109, %2 : vector<8x128xf32>
    %113 = arith.andi %111, %112 : vector<8x128xi1>
    %114 = arith.cmpf ole, %109, %3 : vector<8x128xf32>
    %115 = arith.andi %113, %114 : vector<8x128xi1>
    %116 = arith.subf %97, %101 : vector<8x128xf32>
    %117 = vector.broadcast %94 : f32 to vector<8x128xf32>
    %118 = arith.mulf %116, %117 : vector<8x128xf32>
    %119 = arith.subf %99, %103 : vector<8x128xf32>
    %120 = vector.broadcast %95 : f32 to vector<8x128xf32>
    %121 = arith.mulf %119, %120 : vector<8x128xf32>
    %122 = arith.mulf %118, %118 : vector<8x128xf32>
    %123 = arith.mulf %121, %121 : vector<8x128xf32>
    %124 = arith.addf %122, %123 : vector<8x128xf32>
    %125 = math.sqrt %124 : vector<8x128xf32>
    %cst_16 = arith.constant 5.000000e-01 : f32
    %126 = vector.broadcast %cst_16 : f32 to vector<8x128xf32>
    %127 = arith.mulf %125, %126 : vector<8x128xf32>
    %cst_17 = arith.constant 1.000000e+00 : f32
    %128 = vector.broadcast %cst_17 : f32 to vector<8x128xf32>
    %129 = arith.subf %128, %127 : vector<8x128xf32>
    %cst_18 = arith.constant 0.000000e+00 : f32
    %130 = vector.broadcast %cst_18 : f32 to vector<8x128xf32>
    %131 = arith.select %111, %129, %130 : vector<8x128xi1>, vector<8x128xf32>
    %132 = arith.maximumf %88, %131 : vector<8x128xf32>
    %133 = arith.ori %89, %115 : vector<8x128xi1>
    %cst_19 = arith.constant 0.000000e+00 : f32
    %134 = vector.broadcast %cst_19 : f32 to vector<8x128xf32>
    %135 = arith.select %133, %132, %134 : vector<8x128xi1>, vector<8x128xf32>
    %c0_20 = arith.constant 0 : index
    %c0_21 = arith.constant 0 : index
    %c0_22 = arith.constant 0 : index
    %136 = vector.load %arg6[%c0_20, %c0_21, %c0_22] : memref<2x8x128xf32, #tpu.memory_space<vmem>>, vector<1x8x128xf32>
    %137 = vector.shape_cast %136 : vector<1x8x128xf32> to vector<8x128xf32>
    %138 = math.absf %137 : vector<8x128xf32>
    %cst_23 = arith.constant 0.000000e+00 : f32
    %139 = vector.broadcast %cst_23 : f32 to vector<8x128xf32>
    %140 = arith.subf %139, %138 : vector<8x128xf32>
    %141 = math.exp %140 : vector<8x128xf32>
    %cst_24 = arith.constant 0.000000e+00 : f32
    %142 = vector.broadcast %cst_24 : f32 to vector<8x128xf32>
    %143 = arith.maximumf %137, %142 : vector<8x128xf32>
    %144 = arith.mulf %137, %135 : vector<8x128xf32>
    %145 = arith.subf %143, %144 : vector<8x128xf32>
    %146 = math.log1p %141 : vector<8x128xf32>
    %147 = arith.addf %145, %146 : vector<8x128xf32>
    %cst_25 = arith.constant 1.000000e+00 : f32
    %148 = vector.broadcast %cst_25 : f32 to vector<8x128xf32>
    %149 = arith.addf %148, %141 : vector<8x128xf32>
    %150 = tpu.reciprocal %149 {approx = true} : vector<8x128xf32> -> vector<8x128xf32>
    %151 = arith.mulf %149, %150 : vector<8x128xf32>
    %cst_26 = arith.constant 2.000000e+00 : f32
    %152 = vector.broadcast %cst_26 : f32 to vector<8x128xf32>
    %153 = arith.subf %152, %151 : vector<8x128xf32>
    %154 = arith.mulf %150, %153 : vector<8x128xf32>
    %cst_27 = arith.constant 0.000000e+00 : f32
    %155 = vector.broadcast %cst_27 : f32 to vector<8x128xf32>
    %156 = arith.cmpf oge, %137, %155 : vector<8x128xf32>
    %157 = arith.mulf %141, %154 : vector<8x128xf32>
    %158 = arith.select %156, %154, %157 : vector<8x128xi1>, vector<8x128xf32>
    %159 = arith.addf %158, %158 : vector<8x128xf32>
    %cst_28 = arith.constant 1.000000e+00 : f32
    %160 = vector.broadcast %cst_28 : f32 to vector<8x128xf32>
    %161 = arith.subf %160, %159 : vector<8x128xf32>
    %162 = arith.mulf %135, %161 : vector<8x128xf32>
    %163 = arith.addf %158, %162 : vector<8x128xf32>
    %164 = arith.mulf %163, %163 : vector<8x128xf32>
    %165 = arith.mulf %147, %164 : vector<8x128xf32>
    %cst_29 = arith.constant -5.000000e-01 : f32
    %166 = vector.broadcast %cst_29 : f32 to vector<8x128xf32>
    %167 = arith.mulf %166, %135 : vector<8x128xf32>
    %cst_30 = arith.constant 7.500000e-01 : f32
    %168 = vector.broadcast %cst_30 : f32 to vector<8x128xf32>
    %169 = arith.addf %168, %167 : vector<8x128xf32>
    %170 = arith.mulf %165, %169 : vector<8x128xf32>
    %cst_31 = arith.constant 0.000000e+00 : f32
    %171 = vector.broadcast %cst_31 : f32 to vector<8x128xf32>
    %172 = arith.cmpf ogt, %135, %171 : vector<8x128xf32>
    %173 = arith.extui %172 : vector<8x128xi1> to vector<8x128xi32>
    %174 = arith.sitofp %173 : vector<8x128xi32> to vector<8x128xf32>
    %c18 = arith.constant 18 : index
    %175 = memref.load %arg1[%c18] : memref<36xf32, #tpu.memory_space<smem>>
    %c19 = arith.constant 19 : index
    %176 = memref.load %arg1[%c19] : memref<36xf32, #tpu.memory_space<smem>>
    %c20 = arith.constant 20 : index
    %177 = memref.load %arg1[%c20] : memref<36xf32, #tpu.memory_space<smem>>
    %c21 = arith.constant 21 : index
    %178 = memref.load %arg1[%c21] : memref<36xf32, #tpu.memory_space<smem>>
    %c22 = arith.constant 22 : index
    %179 = memref.load %arg1[%c22] : memref<36xf32, #tpu.memory_space<smem>>
    %c23 = arith.constant 23 : index
    %180 = memref.load %arg1[%c23] : memref<36xf32, #tpu.memory_space<smem>>
    %181 = vector.broadcast %175 : f32 to vector<8x128xf32>
    %182 = arith.subf %0, %181 : vector<8x128xf32>
    %183 = vector.broadcast %176 : f32 to vector<8x128xf32>
    %184 = arith.subf %1, %183 : vector<8x128xf32>
    %185 = vector.broadcast %177 : f32 to vector<8x128xf32>
    %186 = arith.subf %185, %0 : vector<8x128xf32>
    %187 = vector.broadcast %178 : f32 to vector<8x128xf32>
    %188 = arith.subf %187, %1 : vector<8x128xf32>
    %189 = arith.minimumf %182, %184 : vector<8x128xf32>
    %190 = arith.minimumf %186, %188 : vector<8x128xf32>
    %191 = arith.minimumf %189, %190 : vector<8x128xf32>
    %192 = arith.maximumf %182, %184 : vector<8x128xf32>
    %193 = arith.maximumf %186, %188 : vector<8x128xf32>
    %194 = arith.maximumf %192, %193 : vector<8x128xf32>
    %cst_32 = arith.constant 0.000000e+00 : f32
    %195 = vector.broadcast %cst_32 : f32 to vector<8x128xf32>
    %196 = arith.cmpf ogt, %191, %195 : vector<8x128xf32>
    %197 = arith.cmpf ogt, %194, %2 : vector<8x128xf32>
    %198 = arith.andi %196, %197 : vector<8x128xi1>
    %199 = arith.cmpf ole, %194, %3 : vector<8x128xf32>
    %200 = arith.andi %198, %199 : vector<8x128xi1>
    %201 = arith.subf %182, %186 : vector<8x128xf32>
    %202 = vector.broadcast %179 : f32 to vector<8x128xf32>
    %203 = arith.mulf %201, %202 : vector<8x128xf32>
    %204 = arith.subf %184, %188 : vector<8x128xf32>
    %205 = vector.broadcast %180 : f32 to vector<8x128xf32>
    %206 = arith.mulf %204, %205 : vector<8x128xf32>
    %207 = arith.mulf %203, %203 : vector<8x128xf32>
    %208 = arith.mulf %206, %206 : vector<8x128xf32>
    %209 = arith.addf %207, %208 : vector<8x128xf32>
    %210 = math.sqrt %209 : vector<8x128xf32>
    %cst_33 = arith.constant 5.000000e-01 : f32
    %211 = vector.broadcast %cst_33 : f32 to vector<8x128xf32>
    %212 = arith.mulf %210, %211 : vector<8x128xf32>
    %cst_34 = arith.constant 1.000000e+00 : f32
    %213 = vector.broadcast %cst_34 : f32 to vector<8x128xf32>
    %214 = arith.subf %213, %212 : vector<8x128xf32>
    %cst_35 = arith.constant 0.000000e+00 : f32
    %215 = vector.broadcast %cst_35 : f32 to vector<8x128xf32>
    %216 = arith.select %196, %214, %215 : vector<8x128xi1>, vector<8x128xf32>
    %c24 = arith.constant 24 : index
    %217 = memref.load %arg1[%c24] : memref<36xf32, #tpu.memory_space<smem>>
    %c25 = arith.constant 25 : index
    %218 = memref.load %arg1[%c25] : memref<36xf32, #tpu.memory_space<smem>>
    %c26 = arith.constant 26 : index
    %219 = memref.load %arg1[%c26] : memref<36xf32, #tpu.memory_space<smem>>
    %c27 = arith.constant 27 : index
    %220 = memref.load %arg1[%c27] : memref<36xf32, #tpu.memory_space<smem>>
    %c28 = arith.constant 28 : index
    %221 = memref.load %arg1[%c28] : memref<36xf32, #tpu.memory_space<smem>>
    %c29 = arith.constant 29 : index
    %222 = memref.load %arg1[%c29] : memref<36xf32, #tpu.memory_space<smem>>
    %223 = vector.broadcast %217 : f32 to vector<8x128xf32>
    %224 = arith.subf %0, %223 : vector<8x128xf32>
    %225 = vector.broadcast %218 : f32 to vector<8x128xf32>
    %226 = arith.subf %1, %225 : vector<8x128xf32>
    %227 = vector.broadcast %219 : f32 to vector<8x128xf32>
    %228 = arith.subf %227, %0 : vector<8x128xf32>
    %229 = vector.broadcast %220 : f32 to vector<8x128xf32>
    %230 = arith.subf %229, %1 : vector<8x128xf32>
    %231 = arith.minimumf %224, %226 : vector<8x128xf32>
    %232 = arith.minimumf %228, %230 : vector<8x128xf32>
    %233 = arith.minimumf %231, %232 : vector<8x128xf32>
    %234 = arith.maximumf %224, %226 : vector<8x128xf32>
    %235 = arith.maximumf %228, %230 : vector<8x128xf32>
    %236 = arith.maximumf %234, %235 : vector<8x128xf32>
    %cst_36 = arith.constant 0.000000e+00 : f32
    %237 = vector.broadcast %cst_36 : f32 to vector<8x128xf32>
    %238 = arith.cmpf ogt, %233, %237 : vector<8x128xf32>
    %239 = arith.cmpf ogt, %236, %2 : vector<8x128xf32>
    %240 = arith.andi %238, %239 : vector<8x128xi1>
    %241 = arith.cmpf ole, %236, %3 : vector<8x128xf32>
    %242 = arith.andi %240, %241 : vector<8x128xi1>
    %243 = arith.subf %224, %228 : vector<8x128xf32>
    %244 = vector.broadcast %221 : f32 to vector<8x128xf32>
    %245 = arith.mulf %243, %244 : vector<8x128xf32>
    %246 = arith.subf %226, %230 : vector<8x128xf32>
    %247 = vector.broadcast %222 : f32 to vector<8x128xf32>
    %248 = arith.mulf %246, %247 : vector<8x128xf32>
    %249 = arith.mulf %245, %245 : vector<8x128xf32>
    %250 = arith.mulf %248, %248 : vector<8x128xf32>
    %251 = arith.addf %249, %250 : vector<8x128xf32>
    %252 = math.sqrt %251 : vector<8x128xf32>
    %cst_37 = arith.constant 5.000000e-01 : f32
    %253 = vector.broadcast %cst_37 : f32 to vector<8x128xf32>
    %254 = arith.mulf %252, %253 : vector<8x128xf32>
    %cst_38 = arith.constant 1.000000e+00 : f32
    %255 = vector.broadcast %cst_38 : f32 to vector<8x128xf32>
    %256 = arith.subf %255, %254 : vector<8x128xf32>
    %cst_39 = arith.constant 0.000000e+00 : f32
    %257 = vector.broadcast %cst_39 : f32 to vector<8x128xf32>
    %258 = arith.select %238, %256, %257 : vector<8x128xi1>, vector<8x128xf32>
    %259 = arith.maximumf %216, %258 : vector<8x128xf32>
    %260 = arith.ori %200, %242 : vector<8x128xi1>
    %c30 = arith.constant 30 : index
    %261 = memref.load %arg1[%c30] : memref<36xf32, #tpu.memory_space<smem>>
    %c31 = arith.constant 31 : index
    %262 = memref.load %arg1[%c31] : memref<36xf32, #tpu.memory_space<smem>>
    %c32 = arith.constant 32 : index
    %263 = memref.load %arg1[%c32] : memref<36xf32, #tpu.memory_space<smem>>
    %c33 = arith.constant 33 : index
    %264 = memref.load %arg1[%c33] : memref<36xf32, #tpu.memory_space<smem>>
    %c34 = arith.constant 34 : index
    %265 = memref.load %arg1[%c34] : memref<36xf32, #tpu.memory_space<smem>>
    %c35 = arith.constant 35 : index
    %266 = memref.load %arg1[%c35] : memref<36xf32, #tpu.memory_space<smem>>
    %267 = vector.broadcast %261 : f32 to vector<8x128xf32>
    %268 = arith.subf %0, %267 : vector<8x128xf32>
    %269 = vector.broadcast %262 : f32 to vector<8x128xf32>
    %270 = arith.subf %1, %269 : vector<8x128xf32>
    %271 = vector.broadcast %263 : f32 to vector<8x128xf32>
    %272 = arith.subf %271, %0 : vector<8x128xf32>
    %273 = vector.broadcast %264 : f32 to vector<8x128xf32>
    %274 = arith.subf %273, %1 : vector<8x128xf32>
    %275 = arith.minimumf %268, %270 : vector<8x128xf32>
    %276 = arith.minimumf %272, %274 : vector<8x128xf32>
    %277 = arith.minimumf %275, %276 : vector<8x128xf32>
    %278 = arith.maximumf %268, %270 : vector<8x128xf32>
    %279 = arith.maximumf %272, %274 : vector<8x128xf32>
    %280 = arith.maximumf %278, %279 : vector<8x128xf32>
    %cst_40 = arith.constant 0.000000e+00 : f32
    %281 = vector.broadcast %cst_40 : f32 to vector<8x128xf32>
    %282 = arith.cmpf ogt, %277, %281 : vector<8x128xf32>
    %283 = arith.cmpf ogt, %280, %2 : vector<8x128xf32>
    %284 = arith.andi %282, %283 : vector<8x128xi1>
    %285 = arith.cmpf ole, %280, %3 : vector<8x128xf32>
    %286 = arith.andi %284, %285 : vector<8x128xi1>
    %287 = arith.subf %268, %272 : vector<8x128xf32>
    %288 = vector.broadcast %265 : f32 to vector<8x128xf32>
    %289 = arith.mulf %287, %288 : vector<8x128xf32>
    %290 = arith.subf %270, %274 : vector<8x128xf32>
    %291 = vector.broadcast %266 : f32 to vector<8x128xf32>
    %292 = arith.mulf %290, %291 : vector<8x128xf32>
    %293 = arith.mulf %289, %289 : vector<8x128xf32>
    %294 = arith.mulf %292, %292 : vector<8x128xf32>
    %295 = arith.addf %293, %294 : vector<8x128xf32>
    %296 = math.sqrt %295 : vector<8x128xf32>
    %cst_41 = arith.constant 5.000000e-01 : f32
    %297 = vector.broadcast %cst_41 : f32 to vector<8x128xf32>
    %298 = arith.mulf %296, %297 : vector<8x128xf32>
    %cst_42 = arith.constant 1.000000e+00 : f32
    %299 = vector.broadcast %cst_42 : f32 to vector<8x128xf32>
    %300 = arith.subf %299, %298 : vector<8x128xf32>
    %cst_43 = arith.constant 0.000000e+00 : f32
    %301 = vector.broadcast %cst_43 : f32 to vector<8x128xf32>
    %302 = arith.select %282, %300, %301 : vector<8x128xi1>, vector<8x128xf32>
    %303 = arith.maximumf %259, %302 : vector<8x128xf32>
    %304 = arith.ori %260, %286 : vector<8x128xi1>
    %cst_44 = arith.constant 0.000000e+00 : f32
    %305 = vector.broadcast %cst_44 : f32 to vector<8x128xf32>
    %306 = arith.select %304, %303, %305 : vector<8x128xi1>, vector<8x128xf32>
    %c1_45 = arith.constant 1 : index
    %c0_46 = arith.constant 0 : index
    %c0_47 = arith.constant 0 : index
    %307 = vector.load %arg6[%c1_45, %c0_46, %c0_47] : memref<2x8x128xf32, #tpu.memory_space<vmem>>, vector<1x8x128xf32>
    %308 = vector.shape_cast %307 : vector<1x8x128xf32> to vector<8x128xf32>
    %309 = math.absf %308 : vector<8x128xf32>
    %cst_48 = arith.constant 0.000000e+00 : f32
    %310 = vector.broadcast %cst_48 : f32 to vector<8x128xf32>
    %311 = arith.subf %310, %309 : vector<8x128xf32>
    %312 = math.exp %311 : vector<8x128xf32>
    %cst_49 = arith.constant 0.000000e+00 : f32
    %313 = vector.broadcast %cst_49 : f32 to vector<8x128xf32>
    %314 = arith.maximumf %308, %313 : vector<8x128xf32>
    %315 = arith.mulf %308, %306 : vector<8x128xf32>
    %316 = arith.subf %314, %315 : vector<8x128xf32>
    %317 = math.log1p %312 : vector<8x128xf32>
    %318 = arith.addf %316, %317 : vector<8x128xf32>
    %cst_50 = arith.constant 1.000000e+00 : f32
    %319 = vector.broadcast %cst_50 : f32 to vector<8x128xf32>
    %320 = arith.addf %319, %312 : vector<8x128xf32>
    %321 = tpu.reciprocal %320 {approx = true} : vector<8x128xf32> -> vector<8x128xf32>
    %322 = arith.mulf %320, %321 : vector<8x128xf32>
    %cst_51 = arith.constant 2.000000e+00 : f32
    %323 = vector.broadcast %cst_51 : f32 to vector<8x128xf32>
    %324 = arith.subf %323, %322 : vector<8x128xf32>
    %325 = arith.mulf %321, %324 : vector<8x128xf32>
    %cst_52 = arith.constant 0.000000e+00 : f32
    %326 = vector.broadcast %cst_52 : f32 to vector<8x128xf32>
    %327 = arith.cmpf oge, %308, %326 : vector<8x128xf32>
    %328 = arith.mulf %312, %325 : vector<8x128xf32>
    %329 = arith.select %327, %325, %328 : vector<8x128xi1>, vector<8x128xf32>
    %330 = arith.addf %329, %329 : vector<8x128xf32>
    %cst_53 = arith.constant 1.000000e+00 : f32
    %331 = vector.broadcast %cst_53 : f32 to vector<8x128xf32>
    %332 = arith.subf %331, %330 : vector<8x128xf32>
    %333 = arith.mulf %306, %332 : vector<8x128xf32>
    %334 = arith.addf %329, %333 : vector<8x128xf32>
    %335 = arith.mulf %334, %334 : vector<8x128xf32>
    %336 = arith.mulf %318, %335 : vector<8x128xf32>
    %cst_54 = arith.constant -5.000000e-01 : f32
    %337 = vector.broadcast %cst_54 : f32 to vector<8x128xf32>
    %338 = arith.mulf %337, %306 : vector<8x128xf32>
    %cst_55 = arith.constant 7.500000e-01 : f32
    %339 = vector.broadcast %cst_55 : f32 to vector<8x128xf32>
    %340 = arith.addf %339, %338 : vector<8x128xf32>
    %341 = arith.mulf %336, %340 : vector<8x128xf32>
    %cst_56 = arith.constant 0.000000e+00 : f32
    %342 = vector.broadcast %cst_56 : f32 to vector<8x128xf32>
    %343 = arith.cmpf ogt, %306, %342 : vector<8x128xf32>
    %344 = arith.extui %343 : vector<8x128xi1> to vector<8x128xi32>
    %345 = arith.sitofp %344 : vector<8x128xi32> to vector<8x128xf32>
    %346 = arith.addf %170, %341 : vector<8x128xf32>
    %347 = arith.addf %174, %345 : vector<8x128xf32>
    %348 = vector.shape_cast %346 : vector<8x128xf32> to vector<1x8x128xf32>
    %cst_57 = arith.constant dense<0.000000e+00> : vector<8x128xf32>
    %349 = vector.multi_reduction <add>, %348, %cst_57 [0] : vector<1x8x128xf32> to vector<8x128xf32>
    %c0_58 = arith.constant 0 : index
    %c0_59 = arith.constant 0 : index
    %c0_60 = arith.constant 0 : index
    %350 = vector.load %arg7[%c0_58, %c0_59, %c0_60] : memref<1x16x128xf32, #tpu.memory_space<vmem>>, vector<1x8x128xf32>
    %351 = vector.shape_cast %350 : vector<1x8x128xf32> to vector<8x128xf32>
    %352 = vector.shape_cast %349 : vector<8x128xf32> to vector<1x8x128xf32>
    tpu.vector_store %arg7[%c0_58, %c0_59, %c0_60], %352 {strides = array<i32>} : memref<1x16x128xf32, #tpu.memory_space<vmem>>, vector<1x8x128xf32>,
    %353 = vector.shape_cast %347 : vector<8x128xf32> to vector<1x8x128xf32>
    %cst_61 = arith.constant dense<0.000000e+00> : vector<8x128xf32>
    %354 = vector.multi_reduction <add>, %353, %cst_61 [0] : vector<1x8x128xf32> to vector<8x128xf32>
    %c0_62 = arith.constant 0 : index
    %c8_63 = arith.constant 8 : index
    %c0_64 = arith.constant 0 : index
    %355 = vector.load %arg7[%c0_62, %c8_63, %c0_64] : memref<1x16x128xf32, #tpu.memory_space<vmem>>, vector<1x8x128xf32>
    %356 = vector.shape_cast %355 : vector<1x8x128xf32> to vector<8x128xf32>
    %357 = vector.shape_cast %354 : vector<8x128xf32> to vector<1x8x128xf32>
    tpu.vector_store %arg7[%c0_62, %c8_63, %c0_64], %357 {strides = array<i32>} : memref<1x16x128xf32, #tpu.memory_space<vmem>>, vector<1x8x128xf32>,
    return
  }
  func.func @transform_0(%arg0: i32) -> i32 {
    %c0_i32 = arith.constant 0 : i32
    %c0_i32_0 = arith.constant 0 : i32
    return %c0_i32 : i32
  }
  func.func @transform_1(%arg0: i32) -> (i32, i32) {
    %c0_i32 = arith.constant 0 : i32
    %c0_i32_0 = arith.constant 0 : i32
    return %arg0, %c0_i32 : i32, i32
  }
  func.func @transform_2(%arg0: i32) -> (i32, i32) {
    %c0_i32 = arith.constant 0 : i32
    %c0_i32_0 = arith.constant 0 : i32
    return %arg0, %c0_i32 : i32, i32
  }
  func.func @transform_3(%arg0: i32) -> (i32, i32) {
    %c0_i32 = arith.constant 0 : i32
    %c0_i32_0 = arith.constant 0 : i32
    return %arg0, %c0_i32 : i32, i32
  }
  func.func @transform_4(%arg0: i32) -> (i32, i32) {
    %c0_i32 = arith.constant 0 : i32
    %c0_i32_0 = arith.constant 0 : i32
    return %arg0, %c0_i32 : i32, i32
  }
  func.func @transform_5(%arg0: i32) -> (i32, i32, i32) {
    %c0_i32 = arith.constant 0 : i32
    %c0_i32_0 = arith.constant 0 : i32
    %c0_i32_1 = arith.constant 0 : i32
    return %c0_i32, %arg0, %c0_i32_0 : i32, i32, i32
  }
  func.func @transform_6(%arg0: i32) -> (i32, i32, i32) {
    %c0_i32 = arith.constant 0 : i32
    %c0_i32_0 = arith.constant 0 : i32
    %c0_i32_1 = arith.constant 0 : i32
    return %arg0, %c0_i32, %c0_i32_0 : i32, i32, i32
  }
}

</mosaic_0001>

<llo_original>
// kernel: tpu_custom_call.1
$region0: #{tpu_custom_call.1}
  #allocation0 [shape = 'u32[]', space=smem, size = 0x4, offset = 0x4, fixed_abs, tag = 'smem constant byte address 0x4 - core index']
  #allocation1 [shape = 'u32[72,128]{1,0:T(1,128)}', space=vmem, size = 0x9000, scoped, tag = 'internal scratch']
  %s0 = inlined_call_operand.hbm [shape: f32[36], index: 0, kind: input, shape index: {}]
  %s1 = inlined_call_operand.hbm [shape: f32[8,128], index: 1, kind: input, shape index: {}]
  %s2 = inlined_call_operand.hbm [shape: f32[8,128], index: 2, kind: input, shape index: {}]
  %s3 = inlined_call_operand.hbm [shape: f32[8,128], index: 3, kind: input, shape index: {}]
  %s4 = inlined_call_operand.hbm [shape: f32[8,128], index: 4, kind: input, shape index: {}]
  %s5 = inlined_call_operand.hbm [shape: f32[2,8,128], index: 5, kind: input, shape index: {}]
  %s6 = inlined_call_operand.hbm [shape: f32[1,16,128], index: 6, kind: output, shape index: {}]
  %s7 = sld [smem:[#allocation0]]
  $region58: #{tpu_custom_call.1} parent=0
    _
  %s9 = ssub.s32 1, %s7
  %s10 = scalar_select 0, %s9, %s7
  $region1: #{tpu_custom_call.1} parent=0
    #allocation2 [shape = 'u8[512]{0}', space=smem, size = 0x200, scoped, tag = 'input window, operand 0, single buffered']
    #allocation3 [shape = 's32[1]{0}', space=sflag, size = 0x4, scoped, tag = 'scoped memory for tpu_custom_call.1']
    #allocation4 [shape = 's32[1]{0}', space=sflag, size = 0x4, scoped, tag = 'scoped memory for tpu_custom_call.1']
    #allocation5 [shape = 's32[1]{0}', space=sflag, size = 0x4, scoped, tag = 'scoped memory for tpu_custom_call.1']
    #allocation6 [shape = 'u8[4096]{0}', space=vmem, size = 0x1000, scoped, tag = 'input window, operand 1, single buffered']
    #allocation7 [shape = 'u8[4096]{0}', space=vmem, size = 0x1000, scoped, tag = 'input window, operand 2, single buffered']
    #allocation8 [shape = 's32[1]{0}', space=sflag, size = 0x4, scoped, tag = 'scoped memory for tpu_custom_call.1']
    #allocation9 [shape = 'u8[4096]{0}', space=vmem, size = 0x1000, scoped, tag = 'input window, operand 3, single buffered']
    #allocation10 [shape = 'u8[4096]{0}', space=vmem, size = 0x1000, scoped, tag = 'input window, operand 4, single buffered']
    #allocation11 [shape = 's32[1]{0}', space=sflag, size = 0x4, scoped, tag = 'scoped memory for tpu_custom_call.1']
    #allocation12 [shape = 'u8[8192]{0}', space=vmem, size = 0x2000, scoped, tag = 'input window, operand 5, single buffered']
    #allocation13 [shape = 'u8[8192]{0}', space=vmem, size = 0x2000, scoped, tag = 'output window, operand 0, single buffered']
    %11 = vsyncpa [#allocation5], 0
    %12 = vsyncpa [#allocation3], 0
    %13 = vsyncpa [#allocation8], 0
    %14 = vsyncpa [#allocation11], 0
    %15 = vsyncpa [#allocation4], 0
    // Predicated region
    $region2: #{tpu_custom_call.1} parent=1 // pred_check
      _
    $region3: #{tpu_custom_call.1} parent=1 // pred_check_branch
      %17 = sbr.rel (0) target = $region5
    $region4: #{tpu_custom_call.1} parent=1 // pred_region
      %19 = vsyncadd [#allocation5], 0
      %s21 = sshll.u32 %s0, 4
      %s22 = int_to_ptr.hbm [resolvable:$true] %s21
      %24 = dma.hbm_to_smem %s22, 16, [#allocation2], [#allocation5]
    $region5: #{tpu_custom_call.1} parent=1 // pred_fallthru
      _
    // Predicated region
    $region6: #{tpu_custom_call.1} parent=1 // pred_check
      _
    $region7: #{tpu_custom_call.1} parent=1 // pred_check_branch
      %26 = sbr.rel (0) target = $region9
    $region8: #{tpu_custom_call.1} parent=1 // pred_region
      %28 = vsyncadd [#allocation3], 0
      %s30 = sshll.u32 %s1, 4
      %s31 = int_to_ptr.hbm [resolvable:$true] %s30
      %s32 = sshll.u32 [#allocation6], 4
      %s33 = int_to_ptr.vmem [resolvable:$true] %s32
      %35 = dma.hbm_to_vmem [thread:$0]  %s31, 128, %s33, [#allocation3]
    $region9: #{tpu_custom_call.1} parent=1 // pred_fallthru
      _
    // Predicated region
    $region10: #{tpu_custom_call.1} parent=1 // pred_check
      _
    $region11: #{tpu_custom_call.1} parent=1 // pred_check_branch
      %37 = sbr.rel (0) target = $region13
    $region12: #{tpu_custom_call.1} parent=1 // pred_region
      %39 = vsyncadd [#allocation8], 0
      %s41 = sshll.u32 %s2, 4
      %s42 = int_to_ptr.hbm [resolvable:$true] %s41
      %s43 = sshll.u32 [#allocation7], 4
      %s44 = int_to_ptr.vmem [resolvable:$true] %s43
      %46 = dma.hbm_to_vmem [thread:$0]  %s42, 128, %s44, [#allocation8]
    $region13: #{tpu_custom_call.1} parent=1 // pred_fallthru
      _
    // Predicated region
    $region14: #{tpu_custom_call.1} parent=1 // pred_check
      _
    $region15: #{tpu_custom_call.1} parent=1 // pred_check_branch
      %48 = sbr.rel (0) target = $region17
    $region16: #{tpu_custom_call.1} parent=1 // pred_region
      %50 = vsyncadd [#allocation8], 0
      %s52 = sshll.u32 %s3, 4
      %s53 = int_to_ptr.hbm [resolvable:$true] %s52
      %s54 = sshll.u32 [#allocation9], 4
      %s55 = int_to_ptr.vmem [resolvable:$true] %s54
      %57 = dma.hbm_to_vmem [thread:$0]  %s53, 128, %s55, [#allocation8]
    $region17: #{tpu_custom_call.1} parent=1 // pred_fallthru
      _
    // Predicated region
    $region18: #{tpu_custom_call.1} parent=1 // pred_check
      _
    $region19: #{tpu_custom_call.1} parent=1 // pred_check_branch
      %59 = sbr.rel (0) target = $region21
    $region20: #{tpu_custom_call.1} parent=1 // pred_region
      %61 = vsyncadd [#allocation11], 0
      %s63 = sshll.u32 %s4, 4
      %s64 = int_to_ptr.hbm [resolvable:$true] %s63
      %s65 = sshll.u32 [#allocation10], 4
      %s66 = int_to_ptr.vmem [resolvable:$true] %s65
      %68 = dma.hbm_to_vmem [thread:$0]  %s64, 128, %s66, [#allocation11]
    $region21: #{tpu_custom_call.1} parent=1 // pred_fallthru
      _
    // Predicated region
    $region22: #{tpu_custom_call.1} parent=1 // pred_check
      _
    $region23: #{tpu_custom_call.1} parent=1 // pred_check_branch
      %70 = sbr.rel (0) target = $region25
    $region24: #{tpu_custom_call.1} parent=1 // pred_region
      %72 = vsyncadd [#allocation11], 0
      %s73 = sshll.u32 %s5, 4
      %s74 = int_to_ptr.hbm [resolvable:$true] %s73
      %s75 = sshll.u32 [#allocation12], 4
      %s76 = int_to_ptr.vmem [resolvable:$true] %s75
      %81 = dma.hbm_to_vmem [thread:$0]  %s74, 256, %s76, [#allocation11], 128, 128, 8
    $region25: #{tpu_custom_call.1} parent=1 // pred_fallthru
      _
    // Predicated region
    $region26: #{tpu_custom_call.1} parent=1 // pred_check
      _
    $region27: #{tpu_custom_call.1} parent=1 // pred_check_branch
      %83 = sbr.rel (0) target = $region29
    $region28: #{tpu_custom_call.1} parent=1 // pred_region
      %85 = dma.done [#allocation5], 16
    $region29: #{tpu_custom_call.1} parent=1 // pred_fallthru
      _
    // Predicated region
    $region30: #{tpu_custom_call.1} parent=1 // pred_check
      _
    $region31: #{tpu_custom_call.1} parent=1 // pred_check_branch
      %87 = sbr.rel (0) target = $region33
    $region32: #{tpu_custom_call.1} parent=1 // pred_region
      %89 = dma.done [#allocation3], 128
    $region33: #{tpu_custom_call.1} parent=1 // pred_fallthru
      _
    // Predicated region
    $region34: #{tpu_custom_call.1} parent=1 // pred_check
      _
    $region35: #{tpu_custom_call.1} parent=1 // pred_check_branch
      %91 = sbr.rel (0) target = $region37
    $region36: #{tpu_custom_call.1} parent=1 // pred_region
      %93 = dma.done [#allocation8], 128
    $region37: #{tpu_custom_call.1} parent=1 // pred_fallthru
      _
    // Predicated region
    $region38: #{tpu_custom_call.1} parent=1 // pred_check
      _
    $region39: #{tpu_custom_call.1} parent=1 // pred_check_branch
      %95 = sbr.rel (0) target = $region41
    $region40: #{tpu_custom_call.1} parent=1 // pred_region
      %97 = dma.done [#allocation8], 128
    $region41: #{tpu_custom_call.1} parent=1 // pred_fallthru
      _
    // Predicated region
    $region42: #{tpu_custom_call.1} parent=1 // pred_check
      _
    $region43: #{tpu_custom_call.1} parent=1 // pred_check_branch
      %99 = sbr.rel (0) target = $region45
    $region44: #{tpu_custom_call.1} parent=1 // pred_region
      %101 = dma.done [#allocation11], 128
    $region45: #{tpu_custom_call.1} parent=1 // pred_fallthru
      _
    // Predicated region
    $region46: #{tpu_custom_call.1} parent=1 // pred_check
      _
    $region47: #{tpu_custom_call.1} parent=1 // pred_check_branch
      %103 = sbr.rel (0) target = $region49
    $region48: #{tpu_custom_call.1} parent=1 // pred_region
      %105 = dma.done [#allocation11], 256
    $region49: #{tpu_custom_call.1} parent=1 // pred_fallthru
      _
    %106 = sfence
    %v107 = vld [vmem:[#allocation6] sm:$0xff]
    %v108 = vld [vmem:[#allocation7] sm:$0xff]
    %v109 = vld [vmem:[#allocation9] sm:$0xff]
    %v110 = vld [vmem:[#allocation10] sm:$0xff]
    %s111 = sld [smem:[#allocation2]]
    %s112 = sld [smem:[#allocation2 + $0x1]]
    %s113 = sld [smem:[#allocation2 + $0x2]]
    %s114 = sld [smem:[#allocation2 + $0x3]]
    %s115 = sld [smem:[#allocation2 + $0x4]]
    %s116 = sld [smem:[#allocation2 + $0x5]]
    %v117 = vstv %s111
    %v118 = vsub.f32 %v107, %v117
    %v119 = vstv %s112
    %v120 = vsub.f32 %v108, %v119
    %v121 = vstv %s113
    %v122 = vsub.f32 %v121, %v107
    %v123 = vstv %s114
    %v124 = vsub.f32 %v123, %v108
    %v125 = vmin.f32 %v118, %v120
    %v126 = vmin.f32 %v122, %v124
    %v127 = vmin.f32 %v125, %v126
    %v128 = vmax.f32 %v118, %v120
    %v129 = vmax.f32 %v122, %v124
    %v130 = vmax.f32 %v128, %v129
    %vm131 = vcmp.gt.f32.partialorder %v127, 0.0
    %vm132 = vcmp.gt.f32.partialorder %v130, %v109
    %vm133 = vmand %vm131, %vm132
    %vm134 = vcmp.le.f32.partialorder %v130, %v110
    %vm135 = vmand %vm133, %vm134
    %v136 = vsub.f32 %v118, %v122
    %v137 = vstv %s115
    %v138 = vmul.f32 %v136, %v137
    %v139 = vsub.f32 %v120, %v124
    %v140 = vstv %s116
    %v141 = vmul.f32 %v139, %v140
    %v142 = vmul.f32 %v138, %v138
    %v143 = vmul.f32 %v141, %v141
    %v144 = vadd.f32 %v142, %v143
    %v145 = vrsqrt.pop %v144
    %v146 = vmul.f32 %v145, %v144
    %v147 = vmul.f32 %v146, %v145
    %v148 = vmul.f32 0.5, %v147
    %v149 = vsub.f32 1.5, %v148
    %v150 = vmul.f32 %v145, %v149
    %v151 = vmul.f32 %v144, %v150
    %vm152 = vcmp.eq.f32.partialorder %v144, inf
    %v153 = vsel %vm152, %v144, %v151
    %vm154 = vcmp.eq.f32.partialorder %v144, 0.0
    %v155 = vand.u32 %v144, 2147483648
    %v156 = vsel %vm154, %v155, %v153
    %v157 = vmul.f32 %v156, 0.5
    %v158 = vsub.f32 1.0, %v157
    %v159 = vsel %vm131, %v158, 0.0
    %s160 = sld [smem:[#allocation2 + $0x6]]
    %s161 = sld [smem:[#allocation2 + $0x7]]
    %s162 = sld [smem:[#allocation2 + $0x8]]
    %s163 = sld [smem:[#allocation2 + $0x9]]
    %s164 = sld [smem:[#allocation2 + $0xa]]
    %s165 = sld [smem:[#allocation2 + $0xb]]
    %v166 = vstv %s160
    %v167 = vsub.f32 %v107, %v166
    %v168 = vstv %s161
    %v169 = vsub.f32 %v108, %v168
    %v170 = vstv %s162
    %v171 = vsub.f32 %v170, %v107
    %v172 = vstv %s163
    %v173 = vsub.f32 %v172, %v108
    %v174 = vmin.f32 %v167, %v169
    %v175 = vmin.f32 %v171, %v173
    %v176 = vmin.f32 %v174, %v175
    %v177 = vmax.f32 %v167, %v169
    %v178 = vmax.f32 %v171, %v173
    %v179 = vmax.f32 %v177, %v178
    %vm180 = vcmp.gt.f32.partialorder %v176, 0.0
    %vm181 = vcmp.gt.f32.partialorder %v179, %v109
    %vm182 = vmand %vm180, %vm181
    %vm183 = vcmp.le.f32.partialorder %v179, %v110
    %vm184 = vmand %vm182, %vm183
    %v185 = vsub.f32 %v167, %v171
    %v186 = vstv %s164
    %v187 = vmul.f32 %v185, %v186
    %v188 = vsub.f32 %v169, %v173
    %v189 = vstv %s165
    %v190 = vmul.f32 %v188, %v189
    %v191 = vmul.f32 %v187, %v187
    %v192 = vmul.f32 %v190, %v190
    %v193 = vadd.f32 %v191, %v192
    %v194 = vrsqrt.pop %v193
    %v195 = vmul.f32 %v194, %v193
    %v196 = vmul.f32 %v195, %v194
    %v197 = vmul.f32 0.5, %v196
    %v198 = vsub.f32 1.5, %v197
    %v199 = vmul.f32 %v194, %v198
    %v200 = vmul.f32 %v193, %v199
    %vm201 = vcmp.eq.f32.partialorder %v193, inf
    %v202 = vsel %vm201, %v193, %v200
    %vm203 = vcmp.eq.f32.partialorder %v193, 0.0
    %v204 = vand.u32 %v193, 2147483648
    %v205 = vsel %vm203, %v204, %v202
    %v206 = vmul.f32 %v205, 0.5
    %v207 = vsub.f32 1.0, %v206
    %v208 = vsel %vm180, %v207, 0.0
    %v209 = vmax.f32 %v159, %v208
    %vm210 = vmor %vm135, %vm184
    %s211 = sld [smem:[#allocation2 + $0xc]]
    %s212 = sld [smem:[#allocation2 + $0xd]]
    %s213 = sld [smem:[#allocation2 + $0xe]]
    %s214 = sld [smem:[#allocation2 + $0xf]]
    %s215 = sld [smem:[#allocation2 + $0x10]]
    %s216 = sld [smem:[#allocation2 + $0x11]]
    %v217 = vstv %s211
    %v218 = vsub.f32 %v107, %v217
    %v219 = vstv %s212
    %v220 = vsub.f32 %v108, %v219
    %v221 = vstv %s213
    %v222 = vsub.f32 %v221, %v107
    %v223 = vstv %s214
    %v224 = vsub.f32 %v223, %v108
    %v225 = vmin.f32 %v218, %v220
    %v226 = vmin.f32 %v222, %v224
    %v227 = vmin.f32 %v225, %v226
    %v228 = vmax.f32 %v218, %v220
    %v229 = vmax.f32 %v222, %v224
    %v230 = vmax.f32 %v228, %v229
    %vm231 = vcmp.gt.f32.partialorder %v227, 0.0
    %vm232 = vcmp.gt.f32.partialorder %v230, %v109
    %vm233 = vmand %vm231, %vm232
    %vm234 = vcmp.le.f32.partialorder %v230, %v110
    %vm235 = vmand %vm233, %vm234
    %v236 = vsub.f32 %v218, %v222
    %v237 = vstv %s215
    %v238 = vmul.f32 %v236, %v237
    %v239 = vsub.f32 %v220, %v224
    %v240 = vstv %s216
    %v241 = vmul.f32 %v239, %v240
    %v242 = vmul.f32 %v238, %v238
    %v243 = vmul.f32 %v241, %v241
    %v244 = vadd.f32 %v242, %v243
    %v245 = vrsqrt.pop %v244
    %v246 = vmul.f32 %v245, %v244
    %v247 = vmul.f32 %v246, %v245
    %v248 = vmul.f32 0.5, %v247
    %v249 = vsub.f32 1.5, %v248
    %v250 = vmul.f32 %v245, %v249
    %v251 = vmul.f32 %v244, %v250
    %vm252 = vcmp.eq.f32.partialorder %v244, inf
    %v253 = vsel %vm252, %v244, %v251
    %vm254 = vcmp.eq.f32.partialorder %v244, 0.0
    %v255 = vand.u32 %v244, 2147483648
    %v256 = vsel %vm254, %v255, %v253
    %v257 = vmul.f32 %v256, 0.5
    %v258 = vsub.f32 1.0, %v257
    %v259 = vsel %vm231, %v258, 0.0
    %v260 = vmax.f32 %v209, %v259
    %vm261 = vmor %vm210, %vm235
    %v262 = vsel %vm261, %v260, 0.0
    %v263 = vld [vmem:[#allocation12] sm:$0xff]
    %v264 = vand.u32 2147483647, %v263
    %v265 = vsub.f32 0.0, %v264
    %v266 = vmul.f32 %v265, 1.442695
    %v267 = vpow.pop %v266
    %v268 = vmax.f32 %v263, 0.0
    %v269 = vmul.f32 %v263, %v262
    %v270 = vsub.f32 %v268, %v269
    %v271 = vadd.f32 %v267, 1.0
    %v272 = vlog2.pop %v271
    %v273 = vmul.f32 %v272, 0.6931472
    %v274 = vmul.f32 -0.5, %v267
    %v275 = vadd.f32 %v274, 1.0
    %v276 = vmul.f32 %v275, %v267
    %v277 = vand.u32 2147483647, %v267
    %vm278 = vcmp.lt.f32.partialorder %v277, 0.0004427343
    %v279 = vsel %vm278, %v276, %v273
    %v280 = vadd.f32 %v270, %v279
    %v281 = vadd.f32 %v267, 1.0
    %v282 = vrcp.pop %v281
    %v283 = vmul.f32 %v281, %v282
    %v284 = vsub.f32 2.0, %v283
    %v285 = vmul.f32 %v282, %v284
    %vm286 = vcmp.ge.f32.partialorder %v263, 0.0
    %v287 = vmul.f32 %v267, %v285
    %v288 = vsel %vm286, %v285, %v287
    %v289 = vadd.f32 %v288, %v288
    %v290 = vsub.f32 1.0, %v289
    %v291 = vmul.f32 %v262, %v290
    %v292 = vadd.f32 %v288, %v291
    %v293 = vmul.f32 %v292, %v292
    %v294 = vmul.f32 %v280, %v293
    %v295 = vmul.f32 %v262, -0.5
    %v296 = vadd.f32 %v295, 0.75
    %v297 = vmul.f32 %v294, %v296
    %vm298 = vcmp.gt.f32.partialorder %v262, 0.0
    %v299 = vsel %vm298, 1, 0
    %v300 = vcvt.s32.f32 %v299
    %s301 = sld [smem:[#allocation2 + $0x12]]
    %s302 = sld [smem:[#allocation2 + $0x13]]
    %s303 = sld [smem:[#allocation2 + $0x14]]
    %s304 = sld [smem:[#allocation2 + $0x15]]
    %s305 = sld [smem:[#allocation2 + $0x16]]
    %s306 = sld [smem:[#allocation2 + $0x17]]
    %v307 = vstv %s301
    %v308 = vsub.f32 %v107, %v307
    %v309 = vstv %s302
    %v310 = vsub.f32 %v108, %v309
    %v311 = vstv %s303
    %v312 = vsub.f32 %v311, %v107
    %v313 = vstv %s304
    %v314 = vsub.f32 %v313, %v108
    %v315 = vmin.f32 %v308, %v310
    %v316 = vmin.f32 %v312, %v314
    %v317 = vmin.f32 %v315, %v316
    %v318 = vmax.f32 %v308, %v310
    %v319 = vmax.f32 %v312, %v314
    %v320 = vmax.f32 %v318, %v319
    %vm321 = vcmp.gt.f32.partialorder %v317, 0.0
    %vm322 = vcmp.gt.f32.partialorder %v320, %v109
    %vm323 = vmand %vm321, %vm322
    %vm324 = vcmp.le.f32.partialorder %v320, %v110
    %vm325 = vmand %vm323, %vm324
    %v326 = vsub.f32 %v308, %v312
    %v327 = vstv %s305
    %v328 = vmul.f32 %v326, %v327
    %v329 = vsub.f32 %v310, %v314
    %v330 = vstv %s306
    %v331 = vmul.f32 %v329, %v330
    %v332 = vmul.f32 %v328, %v328
    %v333 = vmul.f32 %v331, %v331
    %v334 = vadd.f32 %v332, %v333
    %v335 = vrsqrt.pop %v334
    %v336 = vmul.f32 %v335, %v334
    %v337 = vmul.f32 %v336, %v335
    %v338 = vmul.f32 0.5, %v337
    %v339 = vsub.f32 1.5, %v338
    %v340 = vmul.f32 %v335, %v339
    %v341 = vmul.f32 %v334, %v340
    %vm342 = vcmp.eq.f32.partialorder %v334, inf
    %v343 = vsel %vm342, %v334, %v341
    %vm344 = vcmp.eq.f32.partialorder %v334, 0.0
    %v345 = vand.u32 %v334, 2147483648
    %v346 = vsel %vm344, %v345, %v343
    %v347 = vmul.f32 %v346, 0.5
    %v348 = vsub.f32 1.0, %v347
    %v349 = vsel %vm321, %v348, 0.0
    %s350 = sld [smem:[#allocation2 + $0x18]]
    %s351 = sld [smem:[#allocation2 + $0x19]]
    %s352 = sld [smem:[#allocation2 + $0x1a]]
    %s353 = sld [smem:[#allocation2 + $0x1b]]
    %s354 = sld [smem:[#allocation2 + $0x1c]]
    %s355 = sld [smem:[#allocation2 + $0x1d]]
    %v356 = vstv %s350
    %v357 = vsub.f32 %v107, %v356
    %v358 = vstv %s351
    %v359 = vsub.f32 %v108, %v358
    %v360 = vstv %s352
    %v361 = vsub.f32 %v360, %v107
    %v362 = vstv %s353
    %v363 = vsub.f32 %v362, %v108
    %v364 = vmin.f32 %v357, %v359
    %v365 = vmin.f32 %v361, %v363
    %v366 = vmin.f32 %v364, %v365
    %v367 = vmax.f32 %v357, %v359
    %v368 = vmax.f32 %v361, %v363
    %v369 = vmax.f32 %v367, %v368
    %vm370 = vcmp.gt.f32.partialorder %v366, 0.0
    %vm371 = vcmp.gt.f32.partialorder %v369, %v109
    %vm372 = vmand %vm370, %vm371
    %vm373 = vcmp.le.f32.partialorder %v369, %v110
    %vm374 = vmand %vm372, %vm373
    %v375 = vsub.f32 %v357, %v361
    %v376 = vstv %s354
    %v377 = vmul.f32 %v375, %v376
    %v378 = vsub.f32 %v359, %v363
    %v379 = vstv %s355
    %v380 = vmul.f32 %v378, %v379
    %v381 = vmul.f32 %v377, %v377
    %v382 = vmul.f32 %v380, %v380
    %v383 = vadd.f32 %v381, %v382
    %v384 = vrsqrt.pop %v383
    %v385 = vmul.f32 %v384, %v383
    %v386 = vmul.f32 %v385, %v384
    %v387 = vmul.f32 0.5, %v386
    %v388 = vsub.f32 1.5, %v387
    %v389 = vmul.f32 %v384, %v388
    %v390 = vmul.f32 %v383, %v389
    %vm391 = vcmp.eq.f32.partialorder %v383, inf
    %v392 = vsel %vm391, %v383, %v390
    %vm393 = vcmp.eq.f32.partialorder %v383, 0.0
    %v394 = vand.u32 %v383, 2147483648
    %v395 = vsel %vm393, %v394, %v392
    %v396 = vmul.f32 %v395, 0.5
    %v397 = vsub.f32 1.0, %v396
    %v398 = vsel %vm370, %v397, 0.0
    %v399 = vmax.f32 %v349, %v398
    %vm400 = vmor %vm325, %vm374
    %s401 = sld [smem:[#allocation2 + $0x1e]]
    %s402 = sld [smem:[#allocation2 + $0x1f]]
    %s403 = sld [smem:[#allocation2 + $0x20]]
    %s404 = sld [smem:[#allocation2 + $0x21]]
    %s405 = sld [smem:[#allocation2 + $0x22]]
    %s406 = sld [smem:[#allocation2 + $0x23]]
    %v407 = vstv %s401
    %v408 = vsub.f32 %v107, %v407
    %v409 = vstv %s402
    %v410 = vsub.f32 %v108, %v409
    %v411 = vstv %s403
    %v412 = vsub.f32 %v411, %v107
    %v413 = vstv %s404
    %v414 = vsub.f32 %v413, %v108
    %v415 = vmin.f32 %v408, %v410
    %v416 = vmin.f32 %v412, %v414
    %v417 = vmin.f32 %v415, %v416
    %v418 = vmax.f32 %v408, %v410
    %v419 = vmax.f32 %v412, %v414
    %v420 = vmax.f32 %v418, %v419
    %vm421 = vcmp.gt.f32.partialorder %v417, 0.0
    %vm422 = vcmp.gt.f32.partialorder %v420, %v109
    %vm423 = vmand %vm421, %vm422
    %vm424 = vcmp.le.f32.partialorder %v420, %v110
    %vm425 = vmand %vm423, %vm424
    %v426 = vsub.f32 %v408, %v412
    %v427 = vstv %s405
    %v428 = vmul.f32 %v426, %v427
    %v429 = vsub.f32 %v410, %v414
    %v430 = vstv %s406
    %v431 = vmul.f32 %v429, %v430
    %v432 = vmul.f32 %v428, %v428
    %v433 = vmul.f32 %v431, %v431
    %v434 = vadd.f32 %v432, %v433
    %v435 = vrsqrt.pop %v434
    %v436 = vmul.f32 %v435, %v434
    %v437 = vmul.f32 %v436, %v435
    %v438 = vmul.f32 0.5, %v437
    %v439 = vsub.f32 1.5, %v438
    %v440 = vmul.f32 %v435, %v439
    %v441 = vmul.f32 %v434, %v440
    %vm442 = vcmp.eq.f32.partialorder %v434, inf
    %v443 = vsel %vm442, %v434, %v441
    %vm444 = vcmp.eq.f32.partialorder %v434, 0.0
    %v445 = vand.u32 %v434, 2147483648
    %v446 = vsel %vm444, %v445, %v443
    %v447 = vmul.f32 %v446, 0.5
    %v448 = vsub.f32 1.0, %v447
    %v449 = vsel %vm421, %v448, 0.0
    %v450 = vmax.f32 %v399, %v449
    %vm451 = vmor %vm400, %vm425
    %v452 = vsel %vm451, %v450, 0.0
    %s453 = scalar_lea.vmem [#allocation12], 8
    %v454 = vld [vmem:[%s453] sm:$0xff]
    %v455 = vand.u32 2147483647, %v454
    %v456 = vsub.f32 0.0, %v455
    %v457 = vmul.f32 %v456, 1.442695
    %v458 = vpow.pop %v457
    %v459 = vmax.f32 %v454, 0.0
    %v460 = vmul.f32 %v454, %v452
    %v461 = vsub.f32 %v459, %v460
    %v462 = vadd.f32 %v458, 1.0
    %v463 = vlog2.pop %v462
    %v464 = vmul.f32 %v463, 0.6931472
    %v465 = vmul.f32 -0.5, %v458
    %v466 = vadd.f32 %v465, 1.0
    %v467 = vmul.f32 %v466, %v458
    %v468 = vand.u32 2147483647, %v458
    %vm469 = vcmp.lt.f32.partialorder %v468, 0.0004427343
    %v470 = vsel %vm469, %v467, %v464
    %v471 = vadd.f32 %v461, %v470
    %v472 = vadd.f32 %v458, 1.0
    %v473 = vrcp.pop %v472
    %v474 = vmul.f32 %v472, %v473
    %v475 = vsub.f32 2.0, %v474
    %v476 = vmul.f32 %v473, %v475
    %vm477 = vcmp.ge.f32.partialorder %v454, 0.0
    %v478 = vmul.f32 %v458, %v476
    %v479 = vsel %vm477, %v476, %v478
    %v480 = vadd.f32 %v479, %v479
    %v481 = vsub.f32 1.0, %v480
    %v482 = vmul.f32 %v452, %v481
    %v483 = vadd.f32 %v479, %v482
    %v484 = vmul.f32 %v483, %v483
    %v485 = vmul.f32 %v471, %v484
    %v486 = vmul.f32 %v452, -0.5
    %v487 = vadd.f32 %v486, 0.75
    %v488 = vmul.f32 %v485, %v487
    %vm489 = vcmp.gt.f32.partialorder %v452, 0.0
    %v490 = vsel %vm489, 1, 0
    %v491 = vcvt.s32.f32 %v490
    %v492 = vadd.f32 %v297, %v488
    %v493 = vadd.f32 %v300, %v491
    %v494 = vadd.f32 %v492, 0.0
    %495 = vst [vmem:[#allocation13] sm:$0xff] %v494
    %v496 = vadd.f32 %v493, 0.0
    %497 = vst [vmem:[#allocation13 + $0x8] sm:$0xff] %v496
    // Predicated region
    $region50: #{tpu_custom_call.1} parent=1 // pred_check
      _
    $region51: #{tpu_custom_call.1} parent=1 // pred_check_branch
      %499 = sbr.rel (0) target = $region53
    $region52: #{tpu_custom_call.1} parent=1 // pred_region
      %501 = vsyncadd [#allocation4], 0
      %s502 = sshll.u32 [#allocation13], 4
      %s503 = int_to_ptr.vmem [resolvable:$true] %s502
      %s504 = sshll.u32 %s6, 4
      %s505 = int_to_ptr.hbm [resolvable:$true] %s504
      %510 = dma.vmem_to_hbm [thread:$0]  %s503, 256, %s505, [#allocation4], 128, 128, 8
    $region53: #{tpu_custom_call.1} parent=1 // pred_fallthru
      _
    // Predicated region
    $region54: #{tpu_custom_call.1} parent=1 // pred_check
      _
    $region55: #{tpu_custom_call.1} parent=1 // pred_check_branch
      %512 = sbr.rel (0) target = $region57
    $region56: #{tpu_custom_call.1} parent=1 // pred_region
      %514 = dma.done [#allocation4], 256
    $region57: #{tpu_custom_call.1} parent=1 // pred_fallthru
      _
    %515 = vsyncpa [#allocation3], 1
    %516 = vsyncpa [#allocation8], 1
    %517 = vsyncpa [#allocation11], 1
    %518 = vsyncpa [#allocation4], 1
    %519 = vsyncpa [#allocation5], 1

</llo_original>
